<compile_context>
chip_gen: v7x
topology: tpu7x:2x2x1
jax: 0.10.0
libtpu: 0.0.40
codegen_flags: <defaults>
</compile_context>

<pallas_src>
import math

import jax
import jax.numpy as jnp
import numpy as np
from jax.experimental import pallas as pl
from jax.experimental.pallas import tpu as pltpu

EPS = float(np.finfo(np.float32).eps)


def _normalizer_kernel(x_ref, means_ref, stds_ref, o_ref):
    # Reciprocal hoisted to the per-feature (1, tile_f) row: only tile_f EUP
    # ops per block; the (tile_b, tile_f) hot path is VPU subtract + multiply.
    # (Multiplying by the full-precision reciprocal differs from a true divide
    #  by ~1 ulp, well inside the rtol used for parity with the PyTorch module.)
    inv = pl.reciprocal(stds_ref[...] + EPS, approx=False)          # (1, tile_f) f32
    x = x_ref[...].astype(jnp.float32)
    o_ref[...] = ((x - means_ref[...]) * inv).astype(o_ref.dtype)


def _vmem_capacity_bytes():
    try:
        return int(pltpu.get_tpu_info().vmem_capacity_bytes)
    except Exception:
        return 64 * 1024 * 1024          # conservative (v7x per-TC VMEM)


def normalizer(x, means, stds, *, target_tile_bytes=None, vmem_limit_bytes=None):
    """x: (B, F); means/stds: (F,). Returns (x - means) / (stds + eps)."""
    B, F = x.shape
    dtype = x.dtype
    itemsize = jnp.dtype(dtype).itemsize

    # ---- Generation-aware tile / VMEM budgets.
    vmem_cap = _vmem_capacity_bytes()
    big_vmem = vmem_cap >= 128 * 1024 * 1024          # v5e / v6e
    if target_tile_bytes is None:
        target_tile_bytes = (8 if big_vmem else 4) * 1024 * 1024
    if vmem_limit_bytes is None:
        vmem_limit_bytes = (64 if big_vmem else 40) * 1024 * 1024

    # ---- Lane packing without pad/slice copies: (B, F) -> (B/k, k*F) with
    # k*F a multiple of 128.  Only enabled when k divides B, so the reshape is
    # a free row-major view.  means/stds are tiled k times so the per-feature
    # broadcast stays exactly aligned.
    k = 128 // math.gcd(F, 128)
    if k > 1 and B % k != 0:
        k = 1                              # never pad: fall back to unpacked layout
    rows = B // k
    Fp = k * F

    x_p = x.reshape(rows, Fp)
    means_f32 = means.reshape(1, F).astype(jnp.float32)
    stds_f32 = stds.reshape(1, F).astype(jnp.float32)
    means_p = jnp.tile(means_f32, (1, k)) if k > 1 else means_f32    # (1, Fp) f32
    stds_p = jnp.tile(stds_f32, (1, k)) if k > 1 else stds_f32       # (1, Fp) f32

    # ---- Feature tiling: bound per-block VMEM independent of F.  2048 is a
    # multiple of 128; a ragged last block is handled by the cdiv grid.
    tile_f = 2048 if Fp > 4096 else Fp

    # ---- Batch tiling: multi-MiB blocks, rounded to the dtype's sublane pack
    # (8 rows for f32, 16 for bf16, 32 for int8/fp8).
    sub = max(8, 32 // itemsize)
    tile_b = target_tile_bytes // max(tile_f * itemsize, 1)
    tile_b = max(sub, (tile_b // sub) * sub)
    if tile_b >= rows:
        tile_b = rows                      # full-extent block (any size allowed)

    # ---- Keep >= 2 parallel grid steps on non-trivial inputs so both v7x
    # TensorCores get work (one extra ~0.35 us step is noise on v5e/v6e).
    total_bytes = rows * Fp * itemsize
    if (pl.cdiv(rows, tile_b) * pl.cdiv(Fp, tile_f) < 2
            and total_bytes >= (1 << 20) and rows >= 2 * sub):
        tile_b = ((pl.cdiv(rows, 2) + sub - 1) // sub) * sub   # multiple of sub, < rows

    grid = (pl.cdiv(rows, tile_b), pl.cdiv(Fp, tile_f))

    out_p = pl.pallas_call(
        _normalizer_kernel,
        out_shape=jax.ShapeDtypeStruct((rows, Fp), dtype),
        grid=grid,
        in_specs=[
            pl.BlockSpec((tile_b, tile_f), lambda i, j: (i, j)),     # x tile
            pl.BlockSpec((1, tile_f), lambda i, j: (0, j)),          # means row (f32)
            pl.BlockSpec((1, tile_f), lambda i, j: (0, j)),          # stds row (f32)
        ],
        out_specs=pl.BlockSpec((tile_b, tile_f), lambda i, j: (i, j)),
        compiler_params=pltpu.CompilerParams(
            dimension_semantics=("parallel", "parallel"),
            vmem_limit_bytes=vmem_limit_bytes,
        ),
    )(x_p, means_p, stds_p)

    return out_p.reshape(B, F)


if __name__ == "__main__":
    key = jax.random.PRNGKey(0)
    kx, km, ks = jax.random.split(key, 3)

    B, F = 16, 32                          # small shapes: batch=16, features=32
    x = jax.random.normal(kx, (B, F), dtype=jnp.float32) * 3.0 + 1.5
    means = jax.random.normal(km, (F,), dtype=jnp.float32)
    stds = jax.random.uniform(ks, (F,), dtype=jnp.float32, minval=0.5, maxval=2.0)

    out = jax.block_until_ready(normalizer(x, means, stds))

    # Reference check (plain JAX, same semantics as the PyTorch module).
    ref = (x - means[None, :]) / (stds[None, :] + EPS)
    np.testing.assert_allclose(np.asarray(out), np.asarray(ref), rtol=1e-5, atol=1e-6)

    print("KERNEL_OK")
</pallas_src>

<mosaic_0001>
module attributes {stable_mosaic.version = 11 : i64} {
  func.func @_normalizer_kernel(%arg0: i32, %arg1: i32, %arg2: memref<4x128xf32, #tpu.memory_space<vmem>>, %arg3: memref<1x128xf32, #tpu.memory_space<vmem>>, %arg4: memref<1x128xf32, #tpu.memory_space<vmem>>, %arg5: memref<4x128xf32, #tpu.memory_space<vmem>>) attributes {dimension_semantics = [#tpu.dimension_semantics<parallel>, #tpu.dimension_semantics<parallel>], iteration_bounds = array<i64: 1, 1>, scalar_prefetch = 0 : i64, scratch_operands = 0 : i64, tpu.core_type = #tpu.core_type<tc>, window_params = [{transform_indices = @transform_0, window_bounds = array<i64: 4, 128>}, {transform_indices = @transform_1, window_bounds = array<i64: 1, 128>}, {transform_indices = @transform_2, window_bounds = array<i64: 1, 128>}, {transform_indices = @transform_3, window_bounds = array<i64: 4, 128>}]} {
    %c0 = arith.constant 0 : index
    %c0_0 = arith.constant 0 : index
    %0 = vector.load %arg4[%c0, %c0_0] : memref<1x128xf32, #tpu.memory_space<vmem>>, vector<1x128xf32>
    %cst = arith.constant 1.1920929E-7 : f32
    %1 = vector.broadcast %cst : f32 to vector<1x128xf32>
    %2 = arith.addf %0, %1 : vector<1x128xf32>
    %3 = tpu.reciprocal %2 : vector<1x128xf32> -> vector<1x128xf32>
    %c0_1 = arith.constant 0 : index
    %c0_2 = arith.constant 0 : index
    %4 = vector.load %arg2[%c0_1, %c0_2] : memref<4x128xf32, #tpu.memory_space<vmem>>, vector<4x128xf32>
    %c0_3 = arith.constant 0 : index
    %c0_4 = arith.constant 0 : index
    %5 = vector.load %arg3[%c0_3, %c0_4] : memref<1x128xf32, #tpu.memory_space<vmem>>, vector<1x128xf32>
    %6 = vector.broadcast %5 : vector<1x128xf32> to vector<4x128xf32>
    %7 = arith.subf %4, %6 : vector<4x128xf32>
    %8 = vector.broadcast %3 : vector<1x128xf32> to vector<4x128xf32>
    %9 = arith.mulf %7, %8 : vector<4x128xf32>
    %c0_5 = arith.constant 0 : index
    %c0_6 = arith.constant 0 : index
    %10 = vector.load %arg5[%c0_5, %c0_6] : memref<4x128xf32, #tpu.memory_space<vmem>>, vector<4x128xf32>
    tpu.vector_store %arg5[%c0_5, %c0_6], %9 {strides = array<i32>} : memref<4x128xf32, #tpu.memory_space<vmem>>, vector<4x128xf32>,
    return
  }
  func.func @transform_0(%arg0: i32, %arg1: i32) -> (i32, i32) {
    %c0_i32 = arith.constant 0 : i32
    return %arg0, %arg1 : i32, i32
  }
  func.func @transform_1(%arg0: i32, %arg1: i32) -> (i32, i32) {
    %c0_i32 = arith.constant 0 : i32
    %c0_i32_0 = arith.constant 0 : i32
    return %c0_i32, %arg1 : i32, i32
  }
  func.func @transform_2(%arg0: i32, %arg1: i32) -> (i32, i32) {
    %c0_i32 = arith.constant 0 : i32
    %c0_i32_0 = arith.constant 0 : i32
    return %c0_i32, %arg1 : i32, i32
  }
  func.func @transform_3(%arg0: i32, %arg1: i32) -> (i32, i32) {
    %c0_i32 = arith.constant 0 : i32
    return %arg0, %arg1 : i32, i32
  }
}

</mosaic_0001>

<llo_original>
// kernel: tpu_custom_call.1
$region0: #{tpu_custom_call.1}
  #allocation0 [shape = 'u32[]', space=smem, size = 0x4, offset = 0x4, fixed_abs, tag = 'smem constant byte address 0x4 - core index']
  #allocation1 [shape = 'u32[144,128]{1,0:T(1,128)}', space=vmem, size = 0x12000, scoped, tag = 'internal scratch']
  %s0 = inlined_call_operand.hbm [shape: f32[4,128], index: 0, kind: input, shape index: {}]
  %s1 = inlined_call_operand.vmem [shape: f32[1,128], index: 1, kind: input, shape index: {}]
  %s2 = inlined_call_operand.vmem [shape: f32[1,128], index: 2, kind: input, shape index: {}]
  %s3 = inlined_call_operand.hbm [shape: f32[4,128], index: 3, kind: output, shape index: {}]
  %s4 = sld [smem:[#allocation0]]
  $region26: #{tpu_custom_call.1} parent=0
    _
  %s6 = ssub.s32 1, %s4
  %s7 = scalar_select 0, %s6, %s4
  $region1: #{tpu_custom_call.1} parent=0
    #allocation2 [shape = 'u8[2048]{0}', space=vmem, size = 0x800, scoped, tag = 'input window, operand 0, single buffered']
    #allocation3 [shape = 's32[1]{0}', space=sflag, size = 0x4, scoped, tag = 'scoped memory for tpu_custom_call.1']
    #allocation4 [shape = 's32[1]{0}', space=sflag, size = 0x4, scoped, tag = 'scoped memory for tpu_custom_call.1']
    #allocation5 [shape = 'u8[2048]{0}', space=vmem, size = 0x800, scoped, tag = 'output window, operand 0, single buffered']
    %8 = vsyncpa [#allocation3], 0
    %9 = vsyncpa [#allocation4], 0
    // Predicated region
    $region2: #{tpu_custom_call.1} parent=1 // pred_check
      _
    $region3: #{tpu_custom_call.1} parent=1 // pred_check_branch
      %11 = sbr.rel (0) target = $region5
    $region4: #{tpu_custom_call.1} parent=1 // pred_region
      %s13 = ssub.s32 64, 64
      %14 = vsyncadd [#allocation3], %s13
      %s16 = sshll.u32 [#allocation2], 4
      %s17 = int_to_ptr.vmem [resolvable:$true] %s16
      %19 = dma.hbm_to_vmem [thread:$0]  %s0, 64, %s17, [#allocation3]
    $region5: #{tpu_custom_call.1} parent=1 // pred_fallthru
      _
    // Predicated region
    $region6: #{tpu_custom_call.1} parent=1 // pred_check
      _
    $region7: #{tpu_custom_call.1} parent=1 // pred_check_branch
      %21 = sbr.rel (0) target = $region9
    $region8: #{tpu_custom_call.1} parent=1 // pred_region
      _
    $region9: #{tpu_custom_call.1} parent=1 // pred_fallthru
      _
    // Predicated region
    $region10: #{tpu_custom_call.1} parent=1 // pred_check
      _
    $region11: #{tpu_custom_call.1} parent=1 // pred_check_branch
      %23 = sbr.rel (0) target = $region13
    $region12: #{tpu_custom_call.1} parent=1 // pred_region
      _
    $region13: #{tpu_custom_call.1} parent=1 // pred_fallthru
      _
    // Predicated region
    $region14: #{tpu_custom_call.1} parent=1 // pred_check
      _
    $region15: #{tpu_custom_call.1} parent=1 // pred_check_branch
      %25 = sbr.rel (0) target = $region17
    $region16: #{tpu_custom_call.1} parent=1 // pred_region
      %26 = dma.done [#allocation3], 64
    $region17: #{tpu_custom_call.1} parent=1 // pred_fallthru
      _
    %v27 = vld [vmem:[%s2] sm:$0x1]
    %v28 = vadd.f32 %v27, 1.1920929e-07
    %v29 = vrcp.pop %v28
    %v30 = vld [vmem:[#allocation2] sm:$0xf]
    %v31 = vld [vmem:[%s1] sm:$0x1]
    %v33 = vlaneseq
    %v34 = vshrl.u32 %v33, 7
    %v35 = vsub.s32 0, %v34
    %v36 = vrot.slane %v31, %v35
    %v38 = vsub.f32 %v30, %v36
    %v40 = vlaneseq
    %v41 = vshrl.u32 %v40, 7
    %v42 = vsub.s32 0, %v41
    %v43 = vrot.slane %v29, %v42
    %v45 = vmul.f32 %v38, %v43
    %46 = vst [vmem:[#allocation5] sm:$0xf] %v45
    // Predicated region
    $region18: #{tpu_custom_call.1} parent=1 // pred_check
      _
    $region19: #{tpu_custom_call.1} parent=1 // pred_check_branch
      %48 = sbr.rel (0) target = $region21
    $region20: #{tpu_custom_call.1} parent=1 // pred_region
      %s50 = ssub.s32 64, 64
      %51 = vsyncadd [#allocation4], %s50
      %s53 = sshll.u32 [#allocation5], 4
      %s54 = int_to_ptr.vmem [resolvable:$true] %s53
      %56 = dma.vmem_to_hbm [thread:$0]  %s54, 64, %s3, [#allocation4]
    $region21: #{tpu_custom_call.1} parent=1 // pred_fallthru
      _
    // Predicated region
    $region22: #{tpu_custom_call.1} parent=1 // pred_check
      _
    $region23: #{tpu_custom_call.1} parent=1 // pred_check_branch
      %58 = sbr.rel (0) target = $region25
    $region24: #{tpu_custom_call.1} parent=1 // pred_region
      %59 = dma.done [#allocation4], 64
    $region25: #{tpu_custom_call.1} parent=1 // pred_fallthru
      _
    %60 = vsyncpa [#allocation3], 1
    %61 = vsyncpa [#allocation4], 1

</llo_original>
